<compile_context>
chip_gen: v7x
topology: tpu7x:2x2x1
jax: 0.10.0
libtpu: 0.0.40
codegen_flags: <defaults>
</compile_context>

<pallas_src>
import math

import jax
import jax.numpy as jnp
from jax.experimental import pallas as pl
from jax.experimental.pallas import tpu as pltpu


def _scale_kernel(pattern_ref, pts_ref, out_ref):
    # pattern_ref: (1, wt) per-lane multiplier; pts_ref/out_ref: (bt, wt) tile.
    out_ref[...] = pts_ref[...] * pattern_ref[...]


def _apply_point_scale(points: jax.Array, scale: jax.Array,
                       *, target_bytes: int = 2 << 20) -> jax.Array:
    """points: (B, N, C) with C >= 3; scale: (3,) xyz scale. Returns (B, N, C)."""
    B, N, C = points.shape
    assert C >= 3, "PointCloudScale needs at least xyz channels"
    NC = N * C
    dtype = points.dtype
    itemsize = jnp.dtype(dtype).itemsize

    flat = points.reshape(B, NC)  # contiguous view: free reshape, no HBM pass

    # One channel period of the multiplier: [s0, s1, s2, 1, ..., 1].
    chan_scale = jnp.concatenate([scale.astype(dtype), jnp.ones((C - 3,), dtype)])

    # ---- Tile selection ----------------------------------------------------
    # wt (lane tile) is a multiple of lcm(C, 128) -- or the full row NC -- so
    # every NC tile starts on a channel boundary (one pattern row serves all
    # tiles) and stores stay full-width unmasked vst.  Block bytes are capped
    # at ~target_bytes independent of N.
    unit = (C * 128) // math.gcd(C, 128)      # lcm(C, 128)
    bt = B if B <= 8 else 8                   # sublane tile: full dim or mult. of 8

    if bt * NC * itemsize <= target_bytes:
        wt = NC                               # whole rows fit in one block
        if B > 8:
            rows = max(8, (target_bytes // max(NC * itemsize, 1)) // 8 * 8)
            bt = int(min(B, rows))            # take more rows per block
    else:
        wt = max(unit, (target_bytes // (bt * itemsize)) // unit * unit)
        if wt >= NC:                          # degenerate: huge C, tiny N
            wt = NC

    grid = (pl.cdiv(B, bt), pl.cdiv(NC, wt))

    # Pattern row: channel multiplier tiled across ONE block width only
    # (<= a few hundred KiB), never across the full N*C row.
    pattern = jnp.tile(chan_scale, (wt // C,)).reshape(1, wt)

    out_flat = pl.pallas_call(
        _scale_kernel,
        out_shape=jax.ShapeDtypeStruct((B, NC), dtype),
        grid_spec=pltpu.PrefetchScalarGridSpec(
            num_scalar_prefetch=0,
            grid=grid,
            in_specs=[
                pl.BlockSpec((1, wt), lambda i, j: (0, 0)),   # fetched once, reused
                pl.BlockSpec((bt, wt), lambda i, j: (i, j)),
            ],
            out_specs=pl.BlockSpec((bt, wt), lambda i, j: (i, j)),
        ),
        compiler_params=pltpu.CompilerParams(
            dimension_semantics=("parallel", "parallel")),
        input_output_aliases={1: 0},          # write in place (torch semantics)
    )(pattern, flat)
    return out_flat.reshape(B, N, C)


def point_cloud_scale(points: jax.Array, key: jax.Array,
                      scale_low: float = 0.9,
                      scale_high: float = 1.1) -> jax.Array:
    """Functional equivalent of PointCloudScale.forward (randomness via `key`)."""
    scale = jax.random.uniform(key, (3,), jnp.float32, scale_low, scale_high)
    return _apply_point_scale(points, scale)


if __name__ == "__main__":
    key = jax.random.PRNGKey(0)
    pkey, skey, p2key = jax.random.split(key, 3)

    # --- Main check: module-sized example -----------------------------------
    B, N, C = 2, 16, 6          # 2 clouds, 16 points, xyz + 3 extra features
    scale_low, scale_high = 0.9, 1.1
    points = jax.random.normal(pkey, (B, N, C), dtype=jnp.float32)

    out = jax.block_until_ready(
        point_cloud_scale(points, skey, scale_low, scale_high))

    # Reference: same scale re-derived from the same key, applied to xyz only.
    scale = jax.random.uniform(skey, (3,), jnp.float32, scale_low, scale_high)
    ref = points.at[:, :, :3].multiply(scale)
    assert out.shape == points.shape and out.dtype == points.dtype
    assert jnp.allclose(out, ref, atol=1e-6, rtol=1e-6)

    # --- Secondary check: exercise the 2-D (batch x NC) tiling path ---------
    # A tiny target_bytes forces NC tiling (wt = lcm(C, 128) = 384) including a
    # masked partial final lane block (NC = 3000 is not a multiple of 384).
    points2 = jax.random.normal(p2key, (2, 500, 6), dtype=jnp.float32)
    scale2 = jnp.array([0.95, 1.05, 1.02], dtype=jnp.float32)
    out2 = jax.block_until_ready(
        _apply_point_scale(points2, scale2, target_bytes=4096))
    ref2 = points2.at[:, :, :3].multiply(scale2)
    assert jnp.allclose(out2, ref2, atol=1e-6, rtol=1e-6)

    print("KERNEL_OK")
</pallas_src>

<mosaic_0001>
module attributes {stable_mosaic.version = 11 : i64} {
  func.func @_scale_kernel(%arg0: i32, %arg1: i32, %arg2: memref<1x96xf32, #tpu.memory_space<vmem>>, %arg3: memref<2x96xf32, #tpu.memory_space<vmem>>, %arg4: memref<2x96xf32, #tpu.memory_space<vmem>>) attributes {dimension_semantics = [#tpu.dimension_semantics<parallel>, #tpu.dimension_semantics<parallel>], iteration_bounds = array<i64: 1, 1>, scalar_prefetch = 0 : i64, scratch_operands = 0 : i64, tpu.core_type = #tpu.core_type<tc>, window_params = [{pipeline_mode = #tpu.pipeline_mode<synchronous>, transform_indices = @transform_0, window_bounds = array<i64: 1, 96>}, {transform_indices = @transform_1, window_bounds = array<i64: 2, 96>}, {transform_indices = @transform_2, window_bounds = array<i64: 2, 96>}]} {
    %c0 = arith.constant 0 : index
    %c0_0 = arith.constant 0 : index
    %0 = vector.load %arg3[%c0, %c0_0] : memref<2x96xf32, #tpu.memory_space<vmem>>, vector<2x96xf32>
    %c0_1 = arith.constant 0 : index
    %c0_2 = arith.constant 0 : index
    %1 = vector.load %arg2[%c0_1, %c0_2] : memref<1x96xf32, #tpu.memory_space<vmem>>, vector<1x96xf32>
    %2 = vector.broadcast %1 : vector<1x96xf32> to vector<2x96xf32>
    %3 = arith.mulf %0, %2 : vector<2x96xf32>
    %c0_3 = arith.constant 0 : index
    %c0_4 = arith.constant 0 : index
    %4 = vector.load %arg4[%c0_3, %c0_4] : memref<2x96xf32, #tpu.memory_space<vmem>>, vector<2x96xf32>
    tpu.vector_store %arg4[%c0_3, %c0_4], %3 {strides = array<i32>} : memref<2x96xf32, #tpu.memory_space<vmem>>, vector<2x96xf32>,
    return
  }
  func.func @transform_0(%arg0: i32, %arg1: i32) -> (i32, i32) {
    %c0_i32 = arith.constant 0 : i32
    %c0_i32_0 = arith.constant 0 : i32
    %c0_i32_1 = arith.constant 0 : i32
    return %c0_i32, %c0_i32_0 : i32, i32
  }
  func.func @transform_1(%arg0: i32, %arg1: i32) -> (i32, i32) {
    %c0_i32 = arith.constant 0 : i32
    return %arg0, %arg1 : i32, i32
  }
  func.func @transform_2(%arg0: i32, %arg1: i32) -> (i32, i32) {
    %c0_i32 = arith.constant 0 : i32
    return %arg0, %arg1 : i32, i32
  }
}

</mosaic_0001>

<llo_original>
// kernel: tpu_custom_call.1
$region0: #{tpu_custom_call.1}
  #allocation0 [shape = 'u32[]', space=smem, size = 0x4, offset = 0x4, fixed_abs, tag = 'smem constant byte address 0x4 - core index']
  #allocation1 [shape = 'u32[144,128]{1,0:T(1,128)}', space=vmem, size = 0x12000, scoped, tag = 'internal scratch']
  %s0 = inlined_call_operand.vmem [shape: f32[1,96], index: 0, kind: input, shape index: {}]
  %s1 = inlined_call_operand.hbm [shape: f32[2,96], index: 1, kind: input, shape index: {}, may-alias: {1,2}]
  %s2 = inlined_call_operand.hbm [shape: f32[2,96], index: 2, kind: output, shape index: {}, may-alias: {1,2}]
  %s3 = sld [smem:[#allocation0]]
  $region22: #{tpu_custom_call.1} parent=0
    _
  %s5 = ssub.s32 1, %s3
  %s6 = scalar_select 0, %s5, %s3
  $region1: #{tpu_custom_call.1} parent=0
    #allocation2 [shape = 'u8[1024]{0}', space=vmem, size = 0x400, scoped, tag = 'input window, operand 1, single buffered']
    #allocation3 [shape = 's32[1]{0}', space=sflag, size = 0x4, scoped, tag = 'scoped memory for tpu_custom_call.1']
    #allocation4 [shape = 's32[1]{0}', space=sflag, size = 0x4, scoped, tag = 'scoped memory for tpu_custom_call.1']
    #allocation5 [shape = 'u8[1024]{0}', space=vmem, size = 0x400, scoped, tag = 'output window, operand 0, single buffered']
    %7 = vsyncpa [#allocation3], 0
    %8 = vsyncpa [#allocation4], 0
    // Predicated region
    $region2: #{tpu_custom_call.1} parent=1 // pred_check
      _
    $region3: #{tpu_custom_call.1} parent=1 // pred_check_branch
      %10 = sbr.rel (0) target = $region5
    $region4: #{tpu_custom_call.1} parent=1 // pred_region
      _
    $region5: #{tpu_custom_call.1} parent=1 // pred_fallthru
      _
    // Predicated region
    $region6: #{tpu_custom_call.1} parent=1 // pred_check
      _
    $region7: #{tpu_custom_call.1} parent=1 // pred_check_branch
      %12 = sbr.rel (0) target = $region9
    $region8: #{tpu_custom_call.1} parent=1 // pred_region
      %s14 = ssub.s32 32, 32
      %15 = vsyncadd [#allocation3], %s14
      %s17 = sshll.u32 [#allocation2], 4
      %s18 = int_to_ptr.vmem [resolvable:$true] %s17
      %20 = dma.hbm_to_vmem [thread:$0]  %s1, 32, %s18, [#allocation3]
    $region9: #{tpu_custom_call.1} parent=1 // pred_fallthru
      _
    // Predicated region
    $region10: #{tpu_custom_call.1} parent=1 // pred_check
      _
    $region11: #{tpu_custom_call.1} parent=1 // pred_check_branch
      %22 = sbr.rel (0) target = $region13
    $region12: #{tpu_custom_call.1} parent=1 // pred_region
      %23 = dma.done [#allocation3], 32
    $region13: #{tpu_custom_call.1} parent=1 // pred_fallthru
      _
    %v24 = vld [vmem:[#allocation2] sm:$0x3]
    %v25 = vld [vmem:[%s0] sm:$0x1]
    %v27 = vlaneseq
    %v28 = vshrl.u32 %v27, 7
    %v29 = vsub.s32 0, %v28
    %v30 = vrot.slane %v25, %v29
    %v32 = vmul.f32 %v24, %v30
    %vm33 = vcmask 779264
    %34 = vst.msk [vmem:[#allocation5] sm:$0x3] %vm33, %v32
    // Predicated region
    $region14: #{tpu_custom_call.1} parent=1 // pred_check
      _
    $region15: #{tpu_custom_call.1} parent=1 // pred_check_branch
      %36 = sbr.rel (0) target = $region17
    $region16: #{tpu_custom_call.1} parent=1 // pred_region
      %s38 = ssub.s32 32, 32
      %39 = vsyncadd [#allocation4], %s38
      %s41 = sshll.u32 [#allocation5], 4
      %s42 = int_to_ptr.vmem [resolvable:$true] %s41
      %44 = dma.vmem_to_hbm [thread:$0]  %s42, 32, %s2, [#allocation4]
    $region17: #{tpu_custom_call.1} parent=1 // pred_fallthru
      _
    // Predicated region
    $region18: #{tpu_custom_call.1} parent=1 // pred_check
      _
    $region19: #{tpu_custom_call.1} parent=1 // pred_check_branch
      %46 = sbr.rel (0) target = $region21
    $region20: #{tpu_custom_call.1} parent=1 // pred_region
      %47 = dma.done [#allocation4], 32
    $region21: #{tpu_custom_call.1} parent=1 // pred_fallthru
      _
    %48 = vsyncpa [#allocation3], 1
    %49 = vsyncpa [#allocation4], 1

</llo_original>
